<compile_context>
chip_gen: v7x
topology: tpu7x:2x2x1
jax: 0.10.0
libtpu: 0.0.40
codegen_flags: <defaults>
</compile_context>

<pallas_src>
import functools

import jax
import jax.numpy as jnp
from jax.experimental import pallas as pl
from jax.experimental.pallas import tpu as pltpu

LANES = 128
SUBLANES = 8


def _cdiv(a, b):
    return -(-a // b)


def _round_up(a, b):
    return _cdiv(a, b) * b


def _tpu_generation():
    try:
        kind = jax.devices()[0].device_kind.lower()
    except Exception:
        return 0
    if "v7" in kind or "7x" in kind:
        return 7
    if "v6" in kind:
        return 6
    if "v5" in kind:
        return 5
    return 0


def _bce_sum_kernel(x_ref, t_ref, o_ref, acc_ref, *, full_rows, rem,
                    block_rows, steps, need_mask):
    c = pl.program_id(0)
    i = pl.program_id(1)

    @pl.when(i == 0)
    def _():
        acc_ref[...] = jnp.zeros_like(acc_ref)

    x = x_ref[...].astype(jnp.float32)
    t = t_ref[...].astype(jnp.float32)
    # Numerically stable BCE-with-logits:
    #   loss = max(x, 0) - x * t + log1p(exp(-|x|))
    loss = jnp.maximum(x, 0.0) - x * t + jnp.log1p(jnp.exp(-jnp.abs(x)))

    def accumulate(vals):
        # Reduce the (block_rows, 128) tile to one (8, 128) vreg with pure
        # VPU adds (sublane-aligned reshape => no relayout), then do a single
        # small RMW on the vreg-sized accumulator.  This halves VMEM ld/st
        # traffic vs. a full-block accumulator and makes the final XLU
        # cross-lane reduce a single vreg.
        acc_ref[...] += jnp.sum(
            vals.reshape(block_rows // SUBLANES, SUBLANES, LANES), axis=0)

    if need_mask:
        # Row-based masking, gated so only the tail / overflow tiles pay for
        # the iota + compare + select.
        base_row = (c * steps + i) * block_rows
        row_limit = full_rows - base_row  # local rows < row_limit fully valid

        @pl.when(row_limit >= block_rows)
        def _():
            accumulate(loss)

        @pl.when(row_limit < block_rows)
        def _():
            row = jax.lax.broadcasted_iota(jnp.int32, (block_rows, LANES), 0)
            mask = row < row_limit
            if rem:
                lane = jax.lax.broadcasted_iota(
                    jnp.int32, (block_rows, LANES), 1)
                mask = mask | ((row == row_limit) & (lane < rem))
            accumulate(jnp.where(mask, loss, 0.0))
    else:
        accumulate(loss)

    @pl.when(i == pl.num_programs(1) - 1)
    def _():
        o_ref[...] = jnp.sum(acc_ref[...]).reshape(1, 1, 1)


def bce_with_logits_loss(logits, targets, size_average=True,
                         _block_rows=None, _num_splits=None):
    """Equivalent of F.binary_cross_entropy_with_logits(logits, targets,
    size_average=size_average) -> scalar."""
    assert logits.shape == targets.shape
    n_elems = logits.size  # static Python int
    assert n_elems > 0

    gen = _tpu_generation()
    if gen >= 7:
        target_block_rows, num_splits = 8192, 2   # 4 MiB f32 / input block
    elif gen == 6:
        target_block_rows, num_splits = 4096, 1   # 2 MiB f32 / input block
    else:
        target_block_rows, num_splits = 2048, 1   # v5e & unknown: stay small
    if _block_rows is not None:
        target_block_rows = _block_rows
    if _num_splits is not None:
        num_splits = _num_splits
    assert target_block_rows % SUBLANES == 0

    full_rows, rem = divmod(n_elems, LANES)
    data_rows = full_rows + (1 if rem else 0)
    rows_total = _round_up(data_rows, SUBLANES)
    n_padded = rows_total * LANES

    # Keep native dtype in HBM; f32 cast happens in-kernel under the DMA.
    x = logits.reshape(-1)
    t = targets.reshape(-1)
    if n_padded != n_elems:
        # Rare fallback (n not a multiple of 8*128): pad only up to the next
        # (8,128) tile -- never to a block multiple (no full extra HBM copy in
        # the common NCHW case, where n % 1024 == 0 and this branch is dead).
        x = jnp.pad(x, (0, n_padded - n_elems))
        t = jnp.pad(t, (0, n_padded - n_elems))
    x2 = x.reshape(rows_total, LANES)
    t2 = t.reshape(rows_total, LANES)

    block_rows = min(target_block_rows, rows_total)
    num_blocks = _cdiv(rows_total, block_rows)
    steps = _cdiv(num_blocks, num_splits)
    covered_rows = num_splits * steps * block_rows
    need_mask = (rem != 0) or (covered_rows != full_rows)

    if num_splits * steps == num_blocks:
        in_index_map = lambda c, i: (c * steps + i, 0)
    else:
        # Clamp logically-overflowing block indices onto the last real block;
        # their contribution is zeroed by the in-kernel mask (base_row uses the
        # unclamped logical position).
        last_block = num_blocks - 1
        in_index_map = lambda c, i: (jnp.minimum(c * steps + i, last_block), 0)
    in_spec = pl.BlockSpec((block_rows, LANES), in_index_map)

    if num_splits > 1 and gen >= 7:
        # Shard the leading axis across v7x's two TensorCores.
        dims = (getattr(pltpu, "CORE_PARALLEL", "parallel"),
                getattr(pltpu, "ARBITRARY", "arbitrary"))
    else:
        dims = ("arbitrary", "arbitrary")

    blk_bytes = block_rows * LANES * (x2.dtype.itemsize + t2.dtype.itemsize)
    vmem_limit = int(max(2 * blk_bytes + (8 << 20), 32 << 20))

    kernel = functools.partial(
        _bce_sum_kernel,
        full_rows=full_rows,
        rem=rem,
        block_rows=block_rows,
        steps=steps,
        need_mask=need_mask,
    )

    partials = pl.pallas_call(
        kernel,
        out_shape=jax.ShapeDtypeStruct((num_splits, 1, 1), jnp.float32),
        grid_spec=pltpu.PrefetchScalarGridSpec(
            num_scalar_prefetch=0,
            grid=(num_splits, steps),
            in_specs=[in_spec, in_spec],
            out_specs=pl.BlockSpec((1, 1, 1), lambda c, i: (c, 0, 0)),
            scratch_shapes=[pltpu.VMEM((SUBLANES, LANES), jnp.float32)],
        ),
        compiler_params=pltpu.CompilerParams(
            dimension_semantics=dims,
            vmem_limit_bytes=vmem_limit,
        ),
    )(x2, t2)

    total = jnp.sum(partials)
    if size_average:
        return total / jnp.float32(n_elems)
    return total


class BCELoss:
    """Mirror of the PyTorch module's forward semantics
    (binary_cross_entropy_with_logits; expects logits, not probabilities)."""

    def __init__(self, size_average=True):
        self.size_average = size_average

    def __call__(self, input, target, weight=None):
        # TODO(synk): `weight` is accepted but unused, matching the reference
        # module, which never forwards it to F.binary_cross_entropy_with_logits.
        return bce_with_logits_loss(input, target,
                                    size_average=self.size_average)


if __name__ == "__main__":
    key = jax.random.PRNGKey(0)
    k1, k2, k3, k4 = jax.random.split(key, 4)

    def ref_loss(x, t, size_average=True):
        l = jnp.maximum(x, 0.0) - x * t + jnp.log1p(jnp.exp(-jnp.abs(x)))
        return jnp.mean(l) if size_average else jnp.sum(l)

    loss_mod = BCELoss(size_average=True)

    # Primary run: small NCHW logits/targets.
    x = jax.random.normal(k1, (2, 4, 16, 16), dtype=jnp.float32)
    tgt = (jax.random.uniform(k2, (2, 4, 16, 16)) > 0.5).astype(jnp.float32)
    loss = loss_mod(x, tgt)
    jax.block_until_ready(loss)
    assert jnp.allclose(loss, ref_loss(x, tgt), atol=1e-5, rtol=1e-5), loss

    # Ragged shape: exercises the minimal (8,128)-tile pad + in-kernel mask.
    xr = jax.random.normal(k3, (2, 3, 11, 13), dtype=jnp.float32)
    tr = (jax.random.uniform(k4, (2, 3, 11, 13)) > 0.5).astype(jnp.float32)
    loss_r = loss_mod(xr, tr)
    assert jnp.allclose(loss_r, ref_loss(xr, tr), atol=1e-5, rtol=1e-5), loss_r

    # Multi-step accumulation path (forced small block).
    loss_ms = bce_with_logits_loss(x, tgt, size_average=True, _block_rows=8)
    assert jnp.allclose(loss_ms, ref_loss(x, tgt), atol=1e-5, rtol=1e-5), loss_ms

    # Two-split path incl. clamped / fully-masked trailing split (v7x shape of
    # the problem, run with serial semantics here).
    loss_sp = bce_with_logits_loss(x, tgt, size_average=True,
                                   _block_rows=16, _num_splits=2)
    assert jnp.allclose(loss_sp, ref_loss(x, tgt), atol=1e-5, rtol=1e-5), loss_sp

    jax.block_until_ready((loss_r, loss_ms, loss_sp))
    print("KERNEL_OK")
</pallas_src>

<mosaic_0001>
module attributes {stable_mosaic.version = 11 : i64} {
  func.func @_bce_sum_kernel(%arg0: i32, %arg1: i32, %arg2: memref<16x128xf32, #tpu.memory_space<vmem>>, %arg3: memref<16x128xf32, #tpu.memory_space<vmem>>, %arg4: memref<1x1x1xf32, #tpu.memory_space<vmem>>, %arg5: memref<8x128xf32, #tpu.memory_space<vmem>>) attributes {dimension_semantics = [#tpu.dimension_semantics<arbitrary>, #tpu.dimension_semantics<arbitrary>], iteration_bounds = array<i64: 1, 1>, scalar_prefetch = 0 : i64, scratch_operands = 1 : i64, tpu.core_type = #tpu.core_type<tc>, window_params = [{transform_indices = @transform_0, window_bounds = array<i64: 16, 128>}, {transform_indices = @transform_1, window_bounds = array<i64: 16, 128>}, {transform_indices = @transform_2, window_bounds = array<i64: 1, 1, 1>}]} {
    %c0_i32 = arith.constant 0 : i32
    %0 = arith.cmpi eq, %arg1, %c0_i32 : i32
    %1 = arith.extui %0 : i1 to i32
    %c0_i32_0 = arith.constant 0 : i32
    %2 = arith.cmpi ne, %1, %c0_i32_0 : i32
    scf.if %2 {
      %cst_12 = arith.constant 0.000000e+00 : f32
      %23 = vector.broadcast %cst_12 : f32 to vector<8x128xf32>
      %c0_13 = arith.constant 0 : index
      %c0_14 = arith.constant 0 : index
      %24 = vector.load %arg5[%c0_13, %c0_14] : memref<8x128xf32, #tpu.memory_space<vmem>>, vector<8x128xf32>
      tpu.vector_store %arg5[%c0_13, %c0_14], %23 {strides = array<i32>} : memref<8x128xf32, #tpu.memory_space<vmem>>, vector<8x128xf32>,
    } else {
    }
    %c0 = arith.constant 0 : index
    %c0_1 = arith.constant 0 : index
    %3 = vector.load %arg2[%c0, %c0_1] : memref<16x128xf32, #tpu.memory_space<vmem>>, vector<16x128xf32>
    %c0_2 = arith.constant 0 : index
    %c0_3 = arith.constant 0 : index
    %4 = vector.load %arg3[%c0_2, %c0_3] : memref<16x128xf32, #tpu.memory_space<vmem>>, vector<16x128xf32>
    %cst = arith.constant 0.000000e+00 : f32
    %5 = vector.broadcast %cst : f32 to vector<16x128xf32>
    %6 = arith.maximumf %3, %5 : vector<16x128xf32>
    %7 = arith.mulf %3, %4 : vector<16x128xf32>
    %8 = arith.subf %6, %7 : vector<16x128xf32>
    %9 = math.absf %3 : vector<16x128xf32>
    %cst_4 = arith.constant 0.000000e+00 : f32
    %10 = vector.broadcast %cst_4 : f32 to vector<16x128xf32>
    %11 = arith.subf %10, %9 : vector<16x128xf32>
    %12 = math.exp %11 : vector<16x128xf32>
    %13 = math.log1p %12 : vector<16x128xf32>
    %14 = arith.addf %8, %13 : vector<16x128xf32>
    %c0_5 = arith.constant 0 : index
    %c0_6 = arith.constant 0 : index
    %15 = vector.load %arg5[%c0_5, %c0_6] : memref<8x128xf32, #tpu.memory_space<vmem>>, vector<8x128xf32>
    %16 = vector.shape_cast %14 : vector<16x128xf32> to vector<2x8x128xf32>
    %cst_7 = arith.constant dense<0.000000e+00> : vector<8x128xf32>
    %17 = vector.multi_reduction <add>, %16, %cst_7 [0] : vector<2x8x128xf32> to vector<8x128xf32>
    %18 = arith.addf %15, %17 : vector<8x128xf32>
    %c0_8 = arith.constant 0 : index
    %c0_9 = arith.constant 0 : index
    %19 = vector.load %arg5[%c0_8, %c0_9] : memref<8x128xf32, #tpu.memory_space<vmem>>, vector<8x128xf32>
    tpu.vector_store %arg5[%c0_8, %c0_9], %18 {strides = array<i32>} : memref<8x128xf32, #tpu.memory_space<vmem>>, vector<8x128xf32>,
    %c0_i32_10 = arith.constant 0 : i32
    %20 = arith.cmpi eq, %arg1, %c0_i32_10 : i32
    %21 = arith.extui %20 : i1 to i32
    %c0_i32_11 = arith.constant 0 : i32
    %22 = arith.cmpi ne, %21, %c0_i32_11 : i32
    scf.if %22 {
      %c0_12 = arith.constant 0 : index
      %c0_13 = arith.constant 0 : index
      %23 = vector.load %arg5[%c0_12, %c0_13] : memref<8x128xf32, #tpu.memory_space<vmem>>, vector<8x128xf32>
      %24 = vector.shape_cast %23 : vector<8x128xf32> to vector<1x8x128xf32>
      %cst_14 = arith.constant dense<0.000000e+00> : vector<1xf32>
      %25 = vector.multi_reduction <add>, %24, %cst_14 [1, 2] : vector<1x8x128xf32> to vector<1xf32>
      %26 = vector.shape_cast %25 : vector<1xf32> to vector<1x1x1xf32>
      %27 = vector.extract %26[0, 0, 0] : f32 from vector<1x1x1xf32>
      %28 = vector.broadcast %27 : f32 to vector<1x1x1xf32>
      %c0_15 = arith.constant 0 : index
      %c0_16 = arith.constant 0 : index
      %c0_17 = arith.constant 0 : index
      %29 = vector.load %arg4[%c0_15, %c0_16, %c0_17] : memref<1x1x1xf32, #tpu.memory_space<vmem>>, vector<1x1x1xf32>
      tpu.vector_store %arg4[%c0_15, %c0_16, %c0_17], %28 {strides = array<i32>} : memref<1x1x1xf32, #tpu.memory_space<vmem>>, vector<1x1x1xf32>,
    } else {
    }
    return
  }
  func.func @transform_0(%arg0: i32, %arg1: i32) -> (i32, i32) {
    %c1_i32 = arith.constant 1 : i32
    %0 = arith.muli %arg0, %c1_i32 : i32
    %1 = arith.addi %0, %arg1 : i32
    %c0_i32 = arith.constant 0 : i32
    %c0_i32_0 = arith.constant 0 : i32
    return %1, %c0_i32 : i32, i32
  }
  func.func @transform_1(%arg0: i32, %arg1: i32) -> (i32, i32) {
    %c1_i32 = arith.constant 1 : i32
    %0 = arith.muli %arg0, %c1_i32 : i32
    %1 = arith.addi %0, %arg1 : i32
    %c0_i32 = arith.constant 0 : i32
    %c0_i32_0 = arith.constant 0 : i32
    return %1, %c0_i32 : i32, i32
  }
  func.func @transform_2(%arg0: i32, %arg1: i32) -> (i32, i32, i32) {
    %c0_i32 = arith.constant 0 : i32
    %c0_i32_0 = arith.constant 0 : i32
    %c0_i32_1 = arith.constant 0 : i32
    return %arg0, %c0_i32, %c0_i32_0 : i32, i32, i32
  }
}

</mosaic_0001>

<llo_original>
// kernel: tpu_custom_call.1
$region0: #{tpu_custom_call.1}
  #allocation0 [shape = 'u32[]', space=smem, size = 0x4, offset = 0x4, fixed_abs, tag = 'smem constant byte address 0x4 - core index']
  #allocation1 [shape = 'u32[144,128]{1,0:T(1,128)}', space=vmem, size = 0x12000, scoped, tag = 'internal scratch']
  #allocation2 [shape = 'f32[8,128]{1,0:T(8,128)}', space=vmem, size = 0x1000, scoped, tag = 'scratch operand']
  %s0 = inlined_call_operand.hbm [shape: f32[16,128], index: 0, kind: input, shape index: {}]
  %s1 = inlined_call_operand.hbm [shape: f32[16,128], index: 1, kind: input, shape index: {}]
  %s2 = inlined_call_operand.hbm [shape: f32[1,1,1], index: 2, kind: output, shape index: {}]
  %s3 = sld [smem:[#allocation0]]
  $region34: #{tpu_custom_call.1} parent=0
    _
  %s5 = ssub.s32 1, %s3
  %s6 = scalar_select 0, %s5, %s3
  $region1: #{tpu_custom_call.1} parent=0
    #allocation3 [shape = 'u8[8192]{0}', space=vmem, size = 0x2000, scoped, tag = 'input window, operand 0, single buffered']
    #allocation4 [shape = 's32[1]{0}', space=sflag, size = 0x4, scoped, tag = 'scoped memory for tpu_custom_call.1']
    #allocation5 [shape = 's32[1]{0}', space=sflag, size = 0x4, scoped, tag = 'scoped memory for tpu_custom_call.1']
    #allocation6 [shape = 'u8[8192]{0}', space=vmem, size = 0x2000, scoped, tag = 'input window, operand 1, single buffered']
    #allocation7 [shape = 's32[1]{0}', space=sflag, size = 0x4, scoped, tag = 'scoped memory for tpu_custom_call.1']
    #allocation8 [shape = 'u8[512]{0}', space=vmem, size = 0x400, scoped, tag = 'output window, operand 0, single buffered']
    %7 = vsyncpa [#allocation4], 0
    %8 = vsyncpa [#allocation7], 0
    %9 = vsyncpa [#allocation5], 0
    // Predicated region
    $region2: #{tpu_custom_call.1} parent=1 // pred_check
      _
    $region3: #{tpu_custom_call.1} parent=1 // pred_check_branch
      %11 = sbr.rel (0) target = $region5
    $region4: #{tpu_custom_call.1} parent=1 // pred_region
      %s12 = sadd.s32 0, 0
      %s13 = smul.u32 2, %s12
      %s15 = ssub.s32 256, 256
      %16 = vsyncadd [#allocation4], %s15
      %s17 = smul.addr %s13, 128
      %s18 = scalar_lea.hbm %s0, %s17
      %s19 = sshll.u32 [#allocation3], 4
      %s20 = int_to_ptr.vmem [resolvable:$true] %s19
      %25 = dma.hbm_to_vmem [thread:$0]  %s18, 256, %s20, [#allocation4], 128, 128, 8
    $region5: #{tpu_custom_call.1} parent=1 // pred_fallthru
      _
    // Predicated region
    $region6: #{tpu_custom_call.1} parent=1 // pred_check
      _
    $region7: #{tpu_custom_call.1} parent=1 // pred_check_branch
      %27 = sbr.rel (0) target = $region9
    $region8: #{tpu_custom_call.1} parent=1 // pred_region
      %s28 = sadd.s32 0, 0
      %s29 = smul.u32 2, %s28
      %s31 = ssub.s32 256, 256
      %32 = vsyncadd [#allocation7], %s31
      %s33 = smul.addr %s29, 128
      %s34 = scalar_lea.hbm %s1, %s33
      %s35 = sshll.u32 [#allocation6], 4
      %s36 = int_to_ptr.vmem [resolvable:$true] %s35
      %41 = dma.hbm_to_vmem [thread:$0]  %s34, 256, %s36, [#allocation7], 128, 128, 8
    $region9: #{tpu_custom_call.1} parent=1 // pred_fallthru
      _
    // Predicated region
    $region10: #{tpu_custom_call.1} parent=1 // pred_check
      _
    $region11: #{tpu_custom_call.1} parent=1 // pred_check_branch
      %43 = sbr.rel (0) target = $region13
    $region12: #{tpu_custom_call.1} parent=1 // pred_region
      %44 = dma.done [#allocation4], 256
    $region13: #{tpu_custom_call.1} parent=1 // pred_fallthru
      _
    // Predicated region
    $region14: #{tpu_custom_call.1} parent=1 // pred_check
      _
    $region15: #{tpu_custom_call.1} parent=1 // pred_check_branch
      %46 = sbr.rel (0) target = $region17
    $region16: #{tpu_custom_call.1} parent=1 // pred_region
      %47 = dma.done [#allocation7], 256
    $region17: #{tpu_custom_call.1} parent=1 // pred_fallthru
      _
    %s48 = sadd.s32 0, 0
    %s49 = smul.u32 2, %s48
    %s50 = sadd.s32 0, 0
    %s51 = smul.u32 2, %s50
    %p52 = scmp.eq.s32.totalorder 0, 0
    // Predicated region
    $region18: #{tpu_custom_call.1} parent=1 // pred_check
      %p53 = pneg %p52
    $region19: #{tpu_custom_call.1} parent=1 // pred_check_branch
      %55 = sbr.rel (%p53) target = $region21
    $region20: #{tpu_custom_call.1} parent=1 // pred_region
      %56 = vst [vmem:[#allocation2] sm:$0xff] 0.0
    $region21: #{tpu_custom_call.1} parent=1 // pred_fallthru
      _
    %v57 = vld [vmem:[#allocation3] sm:$0xff]
    %v58 = vld [vmem:[#allocation3 + $0x8] sm:$0xff]
    %v59 = vld [vmem:[#allocation6] sm:$0xff]
    %v60 = vld [vmem:[#allocation6 + $0x8] sm:$0xff]
    %v61 = vmax.f32 %v57, 0.0
    %v62 = vmax.f32 %v58, 0.0
    %v63 = vmul.f32 %v57, %v59
    %v64 = vmul.f32 %v58, %v60
    %v65 = vsub.f32 %v61, %v63
    %v66 = vsub.f32 %v62, %v64
    %v67 = vand.u32 2147483647, %v57
    %v68 = vand.u32 2147483647, %v58
    %v69 = vsub.f32 0.0, %v67
    %v70 = vsub.f32 0.0, %v68
    %v71 = vmul.f32 %v69, 1.442695
    %v72 = vpow.pop %v71
    %v73 = vmul.f32 %v70, 1.442695
    %v74 = vpow.pop %v73
    %v75 = vadd.f32 %v72, 1.0
    %v76 = vlog2.pop %v75
    %v77 = vmul.f32 %v76, 0.6931472
    %v78 = vmul.f32 -0.5, %v72
    %v79 = vadd.f32 %v78, 1.0
    %v80 = vmul.f32 %v79, %v72
    %v81 = vand.u32 2147483647, %v72
    %vm82 = vcmp.lt.f32.partialorder %v81, 0.0004427343
    %v83 = vsel %vm82, %v80, %v77
    %v84 = vadd.f32 %v74, 1.0
    %v85 = vlog2.pop %v84
    %v86 = vmul.f32 %v85, 0.6931472
    %v87 = vmul.f32 -0.5, %v74
    %v88 = vadd.f32 %v87, 1.0
    %v89 = vmul.f32 %v88, %v74
    %v90 = vand.u32 2147483647, %v74
    %vm91 = vcmp.lt.f32.partialorder %v90, 0.0004427343
    %v92 = vsel %vm91, %v89, %v86
    %v93 = vadd.f32 %v65, %v83
    %v94 = vadd.f32 %v66, %v92
    %v95 = vld [vmem:[#allocation2] sm:$0xff]
    %v96 = vadd.f32 %v93, %v94
    %v97 = vadd.f32 %v95, %v96
    %98 = vst [vmem:[#allocation2] sm:$0xff] %v97
    // Predicated region
    $region22: #{tpu_custom_call.1} parent=1 // pred_check
      %p99 = pneg %p52
    $region23: #{tpu_custom_call.1} parent=1 // pred_check_branch
      %101 = sbr.rel (%p99) target = $region25
    $region24: #{tpu_custom_call.1} parent=1 // pred_region
      %v102 = vld [vmem:[#allocation2] sm:$0xff]
      %103 = vadd.xlane.f32.xlu0 %v102
      %v104 = vpop.xlane.xlu0 %103
      %v105 = vrot.slane %v104, 4
      %v106 = vadd.f32 %v104, %v105
      %v107 = vrot.slane %v106, 2
      %v108 = vadd.f32 %v106, %v107
      %v109 = vrot.slane %v108, 1
      %v110 = vadd.f32 %v108, %v109
      %s111 = vtos %v110
      %v112 = vstv %s111
      %vm113 = vcmask 0
      %114 = vst.msk [vmem:[#allocation8] sm:$0x1] %vm113, %v112
    $region25: #{tpu_custom_call.1} parent=1 // pred_fallthru
      _
    // Predicated region
    $region26: #{tpu_custom_call.1} parent=1 // pred_check
      _
    $region27: #{tpu_custom_call.1} parent=1 // pred_check_branch
      %116 = sbr.rel (0) target = $region29
    $region28: #{tpu_custom_call.1} parent=1 // pred_region
      %s118 = ssub.s32 16, 16
      %119 = vsyncadd [#allocation5], %s118
      %s121 = sshll.u32 [#allocation8], 4
      %s122 = int_to_ptr.vmem [resolvable:$true] %s121
      %124 = dma.vmem_to_hbm [thread:$0]  %s122, 16, %s2, [#allocation5]
    $region29: #{tpu_custom_call.1} parent=1 // pred_fallthru
      _
    // Predicated region
    $region30: #{tpu_custom_call.1} parent=1 // pred_check
      _
    $region31: #{tpu_custom_call.1} parent=1 // pred_check_branch
      %126 = sbr.rel (0) target = $region33
    $region32: #{tpu_custom_call.1} parent=1 // pred_region
      %127 = dma.done [#allocation5], 16
    $region33: #{tpu_custom_call.1} parent=1 // pred_fallthru
      _
    %128 = vsyncpa [#allocation4], 1
    %129 = vsyncpa [#allocation7], 1
    %130 = vsyncpa [#allocation5], 1

</llo_original>
